<compile_context>
chip_gen: v7x
topology: tpu7x:2x2x1
jax: 0.10.0
libtpu: 0.0.40
codegen_flags: <defaults>
</compile_context>

<pallas_src>
import functools

import jax
import jax.numpy as jnp
import numpy as np
from jax.experimental import pallas as pl
from jax.experimental.pallas import tpu as pltpu


def _round_up(a, b):
    return (a + b - 1) // b * b


def _full_spec(shape):
    # Whole array resident, same block for every grid step.
    return pl.BlockSpec(shape, lambda i: (0,) * len(shape))


def _tpu_compiler_params(**kwargs):
    # Mosaic-only options; skip them when Pallas falls back to the CPU interpreter.
    if jax.default_backend() == "tpu":
        return {"compiler_params": pltpu.CompilerParams(**kwargs)}
    return {}


# ---------------- pass A: stage XW = x @ Wg^T (row tiled) ----------------------------

def _xw_kernel(x_ref, wgt_ref, xw_ref, *, matmul_dtype):
    xw = jnp.dot(x_ref[...].astype(matmul_dtype),
                 wgt_ref[...].astype(matmul_dtype),
                 preferred_element_type=jnp.float32)
    xw_ref[...] = xw.astype(xw_ref.dtype)


# ---------------- pass B: GCNConv + ReLU + Linear + ReLU + residual + BN partials ----

def _block_kernel(a_ref, xw_ref, x_ref, bg_ref, wlt_ref, bl_ref,
                  h_ref, sum_ref, ssq_ref, *, n_valid, tm):
    # GCNConv: A_norm row-tile @ (x @ Wg^T) + bg   (bf16 operands, f32 accumulate)
    h = jnp.dot(a_ref[...], xw_ref[...],
                preferred_element_type=jnp.float32) + bg_ref[...]
    h = jnp.maximum(h, 0.0)                                   # ReLU
    # Linear (pre-transposed weight) + ReLU + residual
    h = jnp.dot(h, wlt_ref[...], preferred_element_type=jnp.float32) + bl_ref[...]
    h = jnp.maximum(h, 0.0) + x_ref[...]
    h_ref[...] = h

    # BatchNorm partial statistics; padded rows masked so they do not dilute the stats.
    row = pl.program_id(0) * tm + jax.lax.broadcasted_iota(jnp.int32, h.shape, 0)
    hv = jnp.where(row < n_valid, h, 0.0)
    s = jnp.sum(hv, axis=0)[None, None, :]                    # (1, 1, Hp)
    sq = jnp.sum(hv * hv, axis=0)[None, None, :]
    sub = jax.lax.broadcasted_iota(jnp.int32, sum_ref.shape, 1)
    sum_ref[...] = jnp.where(sub == 0, s, 0.0)
    ssq_ref[...] = jnp.where(sub == 0, sq, 0.0)


# ---------------- pass C: BatchNorm (training-mode batch stats) + Dropout ------------

def _bn_dropout_kernel(h_ref, sum_ref, ssq_ref, gamma_ref, beta_ref, bits_ref,
                       out_ref, *, n_valid, eps, p, training):
    hp = h_ref.shape[-1]
    total = jnp.sum(sum_ref[...].reshape(-1, hp), axis=0, keepdims=True)    # (1, Hp)
    total_sq = jnp.sum(ssq_ref[...].reshape(-1, hp), axis=0, keepdims=True)
    inv_n = 1.0 / float(n_valid)
    mean = total * inv_n
    var = jnp.maximum(total_sq * inv_n - mean * mean, 0.0)    # biased var (training BN)

    h = (h_ref[...] - mean) * jax.lax.rsqrt(var + eps)
    h = h * gamma_ref[...] + beta_ref[...]

    if training and p > 0.0:
        # Inverted dropout via direct uint32 threshold compare (no float conversion).
        thr = min(int(round(p * 4294967296.0)), 4294967295)
        keep = bits_ref[...] >= jnp.uint32(thr)
        h = jnp.where(keep, h * (1.0 / (1.0 - p)), 0.0)

    out_ref[...] = h.astype(out_ref.dtype)


# ---------------- wrapper -------------------------------------------------------------

def fgcn_residual_block(x, a_norm, wg, bg, wl, bl, gamma, beta, dropout_bits,
                        *, p, training=True, eps=1e-5,
                        matmul_dtype=jnp.bfloat16, tm=256):
    """Training-mode forward of FGCNResidualBlock with a dense normalized adjacency."""
    N, H = x.shape
    Hp = _round_up(max(H, 128), 128)          # lane-dense hidden dim
    tm = min(tm, _round_up(N, 8))             # row tile (v7x-safe; multiple of 8)
    Np = _round_up(N, tm)
    ntiles = Np // tm
    f32 = jnp.float32

    def pad2(a, r, c):
        return jnp.pad(a.astype(f32), ((0, r - a.shape[0]), (0, c - a.shape[1])))

    x_p = pad2(x, Np, Hp)
    a_p = pad2(a_norm, Np, Np).astype(matmul_dtype)           # bf16 adjacency (values in [0,1])
    wgt_p = pad2(wg.T, Hp, Hp)                                # pre-transposed (in, out)
    wlt_p = pad2(wl.T, Hp, Hp)
    bg_p = pad2(bg.reshape(1, -1), 1, Hp)
    bl_p = pad2(bl.reshape(1, -1), 1, Hp)
    gamma_p = pad2(gamma.reshape(1, -1), 1, Hp)
    beta_p = pad2(beta.reshape(1, -1), 1, Hp)
    bits_p = jnp.pad(dropout_bits, ((0, Np - N), (0, Hp - H)))

    row_spec = pl.BlockSpec((tm, Hp), lambda i: (i, 0))
    # 48 MiB scoped-VMEM ceiling: above the 16/32 MiB defaults, below v7x's 64 MiB physical.
    vmem_limit = 48 * 1024 * 1024

    # ---- pass A: XW staged once ----
    xw = pl.pallas_call(
        functools.partial(_xw_kernel, matmul_dtype=matmul_dtype),
        grid=(ntiles,),
        in_specs=[row_spec, _full_spec((Hp, Hp))],
        out_specs=pl.BlockSpec((tm, Hp), lambda i: (i, 0)),
        out_shape=jax.ShapeDtypeStruct((Np, Hp), matmul_dtype),
        **_tpu_compiler_params(dimension_semantics=("parallel",),
                               vmem_limit_bytes=vmem_limit),
    )(x_p, wgt_p)

    # ---- pass B: main block + BN partial statistics ----
    cost_b = pl.CostEstimate(
        flops=2 * Np * Np * Hp + 2 * Np * Hp * Hp,
        transcendentals=0,
        bytes_accessed=(a_p.size * a_p.dtype.itemsize
                        + ntiles * xw.size * xw.dtype.itemsize
                        + 3 * Np * Hp * 4),
    )
    h_pre, sums, ssqs = pl.pallas_call(
        functools.partial(_block_kernel, n_valid=N, tm=tm),
        grid=(ntiles,),
        in_specs=[pl.BlockSpec((tm, Np), lambda i: (i, 0)),   # A row tile (bf16)
                  _full_spec((Np, Hp)),                       # staged XW, resident (bf16)
                  row_spec,                                   # x residual tile
                  _full_spec((1, Hp)),                        # bg
                  _full_spec((Hp, Hp)),                       # Wl^T
                  _full_spec((1, Hp))],                       # bl
        out_specs=[row_spec,
                   pl.BlockSpec((1, 8, Hp), lambda i: (i, 0, 0)),
                   pl.BlockSpec((1, 8, Hp), lambda i: (i, 0, 0))],
        out_shape=[jax.ShapeDtypeStruct((Np, Hp), f32),
                   jax.ShapeDtypeStruct((ntiles, 8, Hp), f32),
                   jax.ShapeDtypeStruct((ntiles, 8, Hp), f32)],
        cost_estimate=cost_b,
        **_tpu_compiler_params(dimension_semantics=("parallel",),
                               vmem_limit_bytes=vmem_limit),
    )(a_p, xw, x_p, bg_p, wlt_p, bl_p)

    # ---- pass C: BatchNorm + Dropout ----
    out = pl.pallas_call(
        functools.partial(_bn_dropout_kernel, n_valid=N, eps=float(eps),
                          p=float(p), training=bool(training)),
        grid=(ntiles,),
        in_specs=[row_spec,
                  _full_spec((ntiles, 8, Hp)),
                  _full_spec((ntiles, 8, Hp)),
                  _full_spec((1, Hp)),
                  _full_spec((1, Hp)),
                  pl.BlockSpec((tm, Hp), lambda i: (i, 0))],  # dropout bits tile
        out_specs=row_spec,
        out_shape=jax.ShapeDtypeStruct((Np, Hp), f32),
        **_tpu_compiler_params(dimension_semantics=("parallel",),
                               vmem_limit_bytes=vmem_limit),
    )(h_pre, sums, ssqs, gamma_p, beta_p, bits_p)

    return out[:N, :H]


def build_normalized_adjacency(edge_index, num_nodes):
    """Dense D^{-1/2} (A + I) D^{-1/2}, matching PyG gcn_norm (plain-JAX glue)."""
    src, dst = edge_index[0], edge_index[1]
    a = jnp.zeros((num_nodes, num_nodes), jnp.float32).at[dst, src].add(1.0)
    a = a + jnp.eye(num_nodes, dtype=jnp.float32)             # add_self_loops
    deg = a.sum(axis=1)
    dinv = jnp.where(deg > 0, 1.0 / jnp.sqrt(deg), 0.0)
    return dinv[:, None] * a * dinv[None, :]


def _reference_forward(x, a_norm, wg, bg, wl, bl, gamma, beta, bits,
                       *, p, training, eps, matmul_dtype):
    """Pure-JAX reference with the same dtype policy as the kernel pipeline."""
    xw = jnp.dot(x.astype(matmul_dtype), wg.T.astype(matmul_dtype),
                 preferred_element_type=jnp.float32).astype(matmul_dtype)
    h = jnp.dot(a_norm.astype(matmul_dtype), xw,
                preferred_element_type=jnp.float32) + bg.reshape(1, -1)
    h = jnp.maximum(h, 0.0)
    h = jnp.dot(h, wl.T, preferred_element_type=jnp.float32) + bl.reshape(1, -1)
    h = jnp.maximum(h, 0.0) + x
    mean = jnp.mean(h, axis=0, keepdims=True)
    var = jnp.maximum(jnp.mean(h * h, axis=0, keepdims=True) - mean * mean, 0.0)
    h = (h - mean) * jax.lax.rsqrt(var + eps)
    h = h * gamma.reshape(1, -1) + beta.reshape(1, -1)
    if training and p > 0.0:
        thr = min(int(round(p * 4294967296.0)), 4294967295)
        keep = bits >= jnp.uint32(thr)
        h = jnp.where(keep, h * (1.0 / (1.0 - p)), 0.0)
    return h


if __name__ == "__main__":
    N, H = 16, 32          # nodes, hidden_size
    p_drop = 0.1

    # Deterministic synthetic graph: bidirectional ring over N nodes.
    idx = jnp.arange(N, dtype=jnp.int32)
    src = jnp.concatenate([idx, (idx + 1) % N])
    dst = jnp.concatenate([(idx + 1) % N, idx])
    edge_index = jnp.stack([src, dst])                        # (2, 2N)
    a_norm = build_normalized_adjacency(edge_index, N)

    # Deterministic parameter / input init.
    key = jax.random.PRNGKey(0)
    kx, kwg, kbg, kwl, kbl, kdrop = jax.random.split(key, 6)
    x = jax.random.normal(kx, (N, H), jnp.float32)
    wg = jax.random.normal(kwg, (H, H), jnp.float32) * 0.1    # GCNConv weight (out, in)
    bg = jax.random.normal(kbg, (H,), jnp.float32) * 0.1      # GCNConv bias
    wl = jax.random.normal(kwl, (H, H), jnp.float32) * 0.1    # Linear weight (out, in)
    bl = jax.random.normal(kbl, (H,), jnp.float32) * 0.1      # Linear bias
    gamma = jnp.ones((H,), jnp.float32)                       # BN weight
    beta = jnp.zeros((H,), jnp.float32)                       # BN bias
    bits = jax.random.bits(kdrop, (N, H), dtype=jnp.uint32)   # dropout randomness

    out = fgcn_residual_block(x, a_norm, wg, bg, wl, bl, gamma, beta, bits,
                              p=p_drop, training=True)
    jax.block_until_ready(out)

    ref = _reference_forward(x, a_norm, wg, bg, wl, bl, gamma, beta, bits,
                             p=p_drop, training=True, eps=1e-5,
                             matmul_dtype=jnp.bfloat16)
    np.testing.assert_allclose(np.asarray(out), np.asarray(ref), rtol=1e-2, atol=1e-2)
    assert out.shape == (N, H) and out.dtype == jnp.float32
    print("KERNEL_OK")
</pallas_src>

<mosaic_0001>
module attributes {stable_mosaic.version = 11 : i64} {
  func.func @_xw_kernel(%arg0: i32, %arg1: memref<16x128xf32, #tpu.memory_space<vmem>>, %arg2: memref<128x128xf32, #tpu.memory_space<vmem>>, %arg3: memref<16x128xbf16, #tpu.memory_space<vmem>>) attributes {dimension_semantics = [#tpu.dimension_semantics<arbitrary>], iteration_bounds = array<i64: 1>, scalar_prefetch = 0 : i64, scratch_operands = 0 : i64, tpu.core_type = #tpu.core_type<tc>, window_params = [{transform_indices = @transform_0, window_bounds = array<i64: 16, 128>}, {pipeline_mode = #tpu.pipeline_mode<synchronous>, transform_indices = @transform_1, window_bounds = array<i64: 128, 128>}, {transform_indices = @transform_2, window_bounds = array<i64: 16, 128>}]} {
    %c0 = arith.constant 0 : index
    %c0_0 = arith.constant 0 : index
    %0 = vector.load %arg1[%c0, %c0_0] : memref<16x128xf32, #tpu.memory_space<vmem>>, vector<16x128xf32>
    %1 = arith.truncf %0 : vector<16x128xf32> to vector<16x128xbf16>
    %c0_1 = arith.constant 0 : index
    %c0_2 = arith.constant 0 : index
    %2 = vector.load %arg2[%c0_1, %c0_2] : memref<128x128xf32, #tpu.memory_space<vmem>>, vector<128x128xf32>
    %3 = arith.truncf %2 : vector<128x128xf32> to vector<128x128xbf16>
    %cst = arith.constant dense<0.000000e+00> : vector<16x128xf32>
    %4 = tpu.matmul %1, %3, %cst {dimension_numbers = #tpu.dot_dimension_numbers<[1], [0], [0], [1], [0, 0, 1, 1], [], []>} : vector<16x128xbf16>, vector<128x128xbf16>, vector<16x128xf32> -> vector<16x128xf32>
    %5 = arith.truncf %4 : vector<16x128xf32> to vector<16x128xbf16>
    %c0_3 = arith.constant 0 : index
    %c0_4 = arith.constant 0 : index
    %6 = vector.load %arg3[%c0_3, %c0_4] : memref<16x128xbf16, #tpu.memory_space<vmem>>, vector<16x128xbf16>
    tpu.vector_store %arg3[%c0_3, %c0_4], %5 {strides = array<i32>} : memref<16x128xbf16, #tpu.memory_space<vmem>>, vector<16x128xbf16>,
    return
  }
  func.func @transform_0(%arg0: i32) -> (i32, i32) {
    %c0_i32 = arith.constant 0 : i32
    %c0_i32_0 = arith.constant 0 : i32
    return %arg0, %c0_i32 : i32, i32
  }
  func.func @transform_1(%arg0: i32) -> (i32, i32) {
    %c0_i32 = arith.constant 0 : i32
    %c0_i32_0 = arith.constant 0 : i32
    %c0_i32_1 = arith.constant 0 : i32
    return %c0_i32, %c0_i32_0 : i32, i32
  }
  func.func @transform_2(%arg0: i32) -> (i32, i32) {
    %c0_i32 = arith.constant 0 : i32
    %c0_i32_0 = arith.constant 0 : i32
    return %arg0, %c0_i32 : i32, i32
  }
}

</mosaic_0001>

<llo_original>
// kernel: tpu_custom_call.1
$region0: #{tpu_custom_call.1}
  #allocation0 [shape = 'u32[]', space=smem, size = 0x4, offset = 0x4, fixed_abs, tag = 'smem constant byte address 0x4 - core index']
  #allocation1 [shape = 'u32[144,128]{1,0:T(1,128)}', space=vmem, size = 0x12000, scoped, tag = 'internal scratch']
  %s0 = inlined_call_operand.hbm [shape: f32[16,128], index: 0, kind: input, shape index: {}]
  %s1 = inlined_call_operand.hbm [shape: f32[128,128], index: 1, kind: input, shape index: {}]
  %s2 = inlined_call_operand.hbm [shape: bf16[16,128], index: 2, kind: output, shape index: {}]
  %s3 = sld [smem:[#allocation0]]
  $region26: #{tpu_custom_call.1} parent=0
    _
  %s5 = ssub.s32 1, %s3
  %s6 = scalar_select 0, %s5, %s3
  $region1: #{tpu_custom_call.1} parent=0
    #allocation2 [shape = 'u8[8192]{0}', space=vmem, size = 0x2000, scoped, tag = 'input window, operand 0, single buffered']
    #allocation3 [shape = 's32[1]{0}', space=sflag, size = 0x4, scoped, tag = 'scoped memory for tpu_custom_call.1']
    #allocation4 [shape = 's32[1]{0}', space=sflag, size = 0x4, scoped, tag = 'scoped memory for tpu_custom_call.1']
    #allocation5 [shape = 'u8[65536]{0}', space=vmem, size = 0x10000, scoped, tag = 'input window, operand 1, single buffered']
    #allocation6 [shape = 's32[1]{0}', space=sflag, size = 0x4, scoped, tag = 'scoped memory for tpu_custom_call.1']
    #allocation7 [shape = 'u8[4096]{0}', space=vmem, size = 0x1000, scoped, tag = 'output window, operand 0, single buffered']
    %7 = vsyncpa [#allocation3], 0
    %8 = vsyncpa [#allocation6], 0
    %9 = vsyncpa [#allocation4], 0
    // Predicated region
    $region2: #{tpu_custom_call.1} parent=1 // pred_check
      _
    $region3: #{tpu_custom_call.1} parent=1 // pred_check_branch
      %11 = sbr.rel (0) target = $region5
    $region4: #{tpu_custom_call.1} parent=1 // pred_region
      %s13 = ssub.s32 256, 256
      %14 = vsyncadd [#allocation3], %s13
      %s15 = sshll.u32 [#allocation2], 4
      %s16 = int_to_ptr.vmem [resolvable:$true] %s15
      %21 = dma.hbm_to_vmem [thread:$0]  %s0, 256, %s16, [#allocation3], 128, 128, 8
    $region5: #{tpu_custom_call.1} parent=1 // pred_fallthru
      _
    // Predicated region
    $region6: #{tpu_custom_call.1} parent=1 // pred_check
      _
    $region7: #{tpu_custom_call.1} parent=1 // pred_check_branch
      %23 = sbr.rel (0) target = $region9
    $region8: #{tpu_custom_call.1} parent=1 // pred_region
      %s25 = ssub.s32 2048, 2048
      %26 = vsyncadd [#allocation6], %s25
      %s27 = sshll.u32 [#allocation5], 4
      %s28 = int_to_ptr.vmem [resolvable:$true] %s27
      %33 = dma.hbm_to_vmem [thread:$0]  %s1, 2048, %s28, [#allocation6], 128, 128, 8
    $region9: #{tpu_custom_call.1} parent=1 // pred_fallthru
      _
    // Predicated region
    $region10: #{tpu_custom_call.1} parent=1 // pred_check
      _
    $region11: #{tpu_custom_call.1} parent=1 // pred_check_branch
      %35 = sbr.rel (0) target = $region13
    $region12: #{tpu_custom_call.1} parent=1 // pred_region
      %36 = dma.done [#allocation3], 256
    $region13: #{tpu_custom_call.1} parent=1 // pred_fallthru
      _
    // Predicated region
    $region14: #{tpu_custom_call.1} parent=1 // pred_check
      _
    $region15: #{tpu_custom_call.1} parent=1 // pred_check_branch
      %38 = sbr.rel (0) target = $region17
    $region16: #{tpu_custom_call.1} parent=1 // pred_region
      %39 = dma.done [#allocation6], 2048
    $region17: #{tpu_custom_call.1} parent=1 // pred_fallthru
      _
    %v41 = vld [vmem:[#allocation2] sm:$0xff]
    %v42 = vld [vmem:[#allocation2 + $0x8] sm:$0xff]
    %v43 = vpack.c.bf16 %v42, %v41
    %v44 = vld [vmem:[#allocation5] sm:$0xff]
    %v45 = vld [vmem:[#allocation5 + $0x8] sm:$0xff]
    %v46 = vld [vmem:[#allocation5 + $0x10] sm:$0xff]
    %v47 = vld [vmem:[#allocation5 + $0x18] sm:$0xff]
    %v48 = vld [vmem:[#allocation5 + $0x20] sm:$0xff]
    %v49 = vld [vmem:[#allocation5 + $0x28] sm:$0xff]
    %v50 = vld [vmem:[#allocation5 + $0x30] sm:$0xff]
    %v51 = vld [vmem:[#allocation5 + $0x38] sm:$0xff]
    %v52 = vld [vmem:[#allocation5 + $0x40] sm:$0xff]
    %v53 = vld [vmem:[#allocation5 + $0x48] sm:$0xff]
    %v54 = vld [vmem:[#allocation5 + $0x50] sm:$0xff]
    %v55 = vld [vmem:[#allocation5 + $0x58] sm:$0xff]
    %v56 = vld [vmem:[#allocation5 + $0x60] sm:$0xff]
    %v57 = vld [vmem:[#allocation5 + $0x68] sm:$0xff]
    %v58 = vld [vmem:[#allocation5 + $0x70] sm:$0xff]
    %v59 = vld [vmem:[#allocation5 + $0x78] sm:$0xff]
    %v60 = vpack.c.bf16 %v45, %v44
    %v61 = vpack.c.bf16 %v47, %v46
    %v62 = vpack.c.bf16 %v49, %v48
    %v63 = vpack.c.bf16 %v51, %v50
    %v64 = vpack.c.bf16 %v53, %v52
    %v65 = vpack.c.bf16 %v55, %v54
    %v66 = vpack.c.bf16 %v57, %v56
    %v67 = vpack.c.bf16 %v59, %v58
    %68 = vmatprep.subr.bf16.mxu0 0
    %69 = vmatpush1.bf16.msra.mxu0 %v60
    %70 = vmatprep.subr.bf16.mxu0 0
    %71 = vmatpush1.bf16.msra.mxu0 %v61
    %72 = vmatprep.subr.bf16.mxu0 0
    %73 = vmatpush1.bf16.msra.mxu0 %v62
    %74 = vmatprep.subr.bf16.mxu0 0
    %75 = vmatpush1.bf16.msra.mxu0 %v63
    %76 = vmatprep.subr.bf16.mxu0 0
    %77 = vmatpush1.bf16.msra.mxu0 %v64
    %78 = vmatprep.subr.bf16.mxu0 0
    %79 = vmatpush1.bf16.msra.mxu0 %v65
    %80 = vmatprep.subr.bf16.mxu0 0
    %81 = vmatpush1.bf16.msra.mxu0 %v66
    %82 = vmatprep.subr.bf16.mxu0 0
    %83 = vmatpush1.bf16.msra.mxu0 %v67
    %84 = vmatprep.subr.bf16.mxu0 0
    %85 = vmatpush1.bf16.msra.mxu0 0
    %86 = vmatprep.subr.bf16.mxu0 0
    %87 = vmatpush1.bf16.msra.mxu0 0
    %88 = vmatprep.subr.bf16.mxu0 0
    %89 = vmatpush1.bf16.msra.mxu0 0
    %90 = vmatprep.subr.bf16.mxu0 0
    %91 = vmatpush1.bf16.msra.mxu0 0
    %92 = vmatprep.subr.bf16.mxu0 0
    %93 = vmatpush1.bf16.msra.mxu0 0
    %94 = vmatprep.subr.bf16.mxu0 0
    %95 = vmatpush1.bf16.msra.mxu0 0
    %96 = vmatprep.subr.bf16.mxu0 0
    %97 = vmatpush1.bf16.msra.mxu0 0
    %98 = vmatprep.subr.bf16.mxu0 0
    %99 = vmatpush1.bf16.msra.mxu0 0
    %100 = vmatprep.mubr.bf16.mxu0 0
    %101 = vmatmul.mubr.bf16.gmra.mrb[0].mxu0 %v43
    %v102 = vpop.f32.mrb[0].mxu0
    %v103 = vadd.f32 0.0, %v102
    %v104 = vpop.f32.mrb[0].mxu0
    %v105 = vpop.f32.mrb[0].mxu0
    %v106 = vadd.f32 0.0, %v105
    %v107 = vpop.f32.mrb[0].mxu0
    %108 = vdwg.mxu0
    %v109 = vpack.c.bf16 %v106, %v103
    %v111 = vunpack.c.l.b16 %v109
    %v112 = vunpack.c.h.b16 %v109
    %v113 = vpack.c.b16 %v111, %v111
    %v114 = vpack.c.b16 %v112, %v112
    %117 = vst [vmem:[#allocation7] sm:$0xf] %v113
    %118 = vst [vmem:[#allocation7 + $0x4] sm:$0xf] %v114
    // Predicated region
    $region18: #{tpu_custom_call.1} parent=1 // pred_check
      _
    $region19: #{tpu_custom_call.1} parent=1 // pred_check_branch
      %120 = sbr.rel (0) target = $region21
    $region20: #{tpu_custom_call.1} parent=1 // pred_region
      %s122 = ssub.s32 128, 128
      %123 = vsyncadd [#allocation4], %s122
      %s124 = sshll.u32 [#allocation7], 4
      %s125 = int_to_ptr.vmem [resolvable:$true] %s124
      %130 = dma.vmem_to_hbm [thread:$0]  %s125, 128, %s2, [#allocation4], 64, 64, 4
    $region21: #{tpu_custom_call.1} parent=1 // pred_fallthru
      _
    // Predicated region
    $region22: #{tpu_custom_call.1} parent=1 // pred_check
      _
    $region23: #{tpu_custom_call.1} parent=1 // pred_check_branch
      %132 = sbr.rel (0) target = $region25
    $region24: #{tpu_custom_call.1} parent=1 // pred_region
      %133 = dma.done [#allocation4], 128
    $region25: #{tpu_custom_call.1} parent=1 // pred_fallthru
      _
    %134 = vsyncpa [#allocation3], 1
    %135 = vsyncpa [#allocation6], 1
    %136 = vsyncpa [#allocation4], 1

</llo_original>
